<compile_context>
chip_gen: v7x
topology: tpu7x:2x2x1
jax: 0.10.0
libtpu: 0.0.40
codegen_flags: <defaults>
</compile_context>

<pallas_src>
import functools

import jax
import jax.numpy as jnp
from jax.experimental import pallas as pl
from jax.experimental.pallas import tpu as pltpu

HIDDEN = 64   # true hidden size of the DQN
A_PAD = 8     # action dim padded to the f32 sublane minimum


def _round_up(x, m):
    return (x + m - 1) // m * m


def dqn_kernel(xt_ref, w1_ref, w2_ref, w3_ref, b1_ref, b2_ref, b3_ref, o_ref):
    """Transposed layout: batch on lanes.

    xt_ref: [S_pad, tb] bf16      (x^T, zero-padded features/batch)
    w1_ref: [64, S_pad] bf16      (PyTorch-native [out, in] weight)
    w2_ref: [64, 64]    bf16
    w3_ref: [8, 64]     bf16      (rows >= A are zero)
    b*_ref: [64,1]/[64,1]/[8,1] f32 (lane-broadcast bias columns)
    o_ref : [8, tb]     f32       (q^T; rows >= A are zero)
    """
    # Layer 1: bf16 operands on the MXU, f32 accumulate, f32 elementwise.
    h1 = jnp.dot(w1_ref[...], xt_ref[...], preferred_element_type=jnp.float32)
    h1 = jnp.maximum(h1 + b1_ref[...], 0.0)                      # [64, tb] f32
    # Layer 2
    h2 = jnp.dot(w2_ref[...], h1.astype(jnp.bfloat16),
                 preferred_element_type=jnp.float32)
    h2 = jnp.maximum(h2 + b2_ref[...], 0.0)                      # [64, tb] f32
    # Layer 3 (no activation)
    q = jnp.dot(w3_ref[...], h2.astype(jnp.bfloat16),
                preferred_element_type=jnp.float32)
    o_ref[...] = (q + b3_ref[...]).astype(o_ref.dtype)           # [8, tb] f32


def pack_params(params, state_size, action_size, hidden=HIDDEN):
    """Pack PyTorch-layout params ([out,in] weights, [out] biases) for the kernel."""
    s_pad = _round_up(state_size, 16)   # bf16 sublane packing granule
    w1 = (jnp.zeros((hidden, s_pad), jnp.float32)
          .at[:, :state_size].set(params["w1"]).astype(jnp.bfloat16))
    w2 = params["w2"].astype(jnp.bfloat16)                        # [64, 64]
    w3 = (jnp.zeros((A_PAD, hidden), jnp.float32)
          .at[:action_size, :].set(params["w3"]).astype(jnp.bfloat16))
    b1 = params["b1"].reshape(hidden, 1).astype(jnp.float32)
    b2 = params["b2"].reshape(hidden, 1).astype(jnp.float32)
    b3 = (jnp.zeros((A_PAD, 1), jnp.float32)
          .at[:action_size, 0].set(params["b3"]))
    return (w1, w2, w3, b1, b2, b3)


@functools.partial(jax.jit, static_argnames=("action_size", "block_b"))
def dqn_forward(x, packed, *, action_size, block_b=2048):
    """x: [B, S] float32 -> [B, action_size] float32."""
    w1, w2, w3, b1, b2, b3 = packed
    B, S = x.shape
    s_pad = w1.shape[1]
    a_pad = w3.shape[0]

    # Batch tile on the lane dim: clamp to a multiple of 128 (review note on
    # ill-formed block_b values).
    block_b = max(128, (block_b // 128) * 128)
    b_pad = _round_up(B, 128)
    n_steps = pl.cdiv(b_pad, block_b)
    if n_steps == 1 and b_pad >= 256:
        n_steps = 2              # >=2 grid steps -> both TensorCores on v7x
    tb = _round_up(pl.cdiv(b_pad, n_steps), 128)
    b_pad = tb * n_steps

    # Single fused wrapper pass: transpose + cast (+ pad only if needed).
    if s_pad == S and b_pad == B:
        xt = x.T.astype(jnp.bfloat16)
    else:
        xt = (jnp.zeros((s_pad, b_pad), jnp.bfloat16)
              .at[:S, :B].set(x.T.astype(jnp.bfloat16)))

    qt = pl.pallas_call(
        dqn_kernel,
        out_shape=jax.ShapeDtypeStruct((a_pad, b_pad), jnp.float32),
        grid=(n_steps,),
        in_specs=[
            pl.BlockSpec((s_pad, tb), lambda i: (0, i)),   # x^T tiles, pipelined
            pl.BlockSpec(w1.shape, lambda i: (0, 0)),      # weights resident
            pl.BlockSpec(w2.shape, lambda i: (0, 0)),
            pl.BlockSpec(w3.shape, lambda i: (0, 0)),
            pl.BlockSpec(b1.shape, lambda i: (0, 0)),      # biases resident
            pl.BlockSpec(b2.shape, lambda i: (0, 0)),
            pl.BlockSpec(b3.shape, lambda i: (0, 0)),
        ],
        out_specs=pl.BlockSpec((a_pad, tb), lambda i: (0, i)),
        compiler_params=pltpu.CompilerParams(
            dimension_semantics=("parallel",),             # megacore on v7x
            vmem_limit_bytes=32 * 1024 * 1024,
        ),
    )(xt, w1, w2, w3, b1, b2, b3)

    # Tiny un-pack: [A_pad, b_pad] -> [B, A].
    return qt[:action_size, :B].T


def init_params(key, state_size, action_size, hidden=HIDDEN):
    """Deterministic synthetic init mirroring nn.Linear ([out,in] weights)."""
    ks = jax.random.split(key, 6)

    def lin(kw, kb, fan_in, fan_out):
        bound = 1.0 / jnp.sqrt(fan_in)
        w = jax.random.uniform(kw, (fan_out, fan_in), jnp.float32, -bound, bound)
        b = jax.random.uniform(kb, (fan_out,), jnp.float32, -bound, bound)
        return w, b

    w1, b1 = lin(ks[0], ks[1], state_size, hidden)
    w2, b2 = lin(ks[2], ks[3], hidden, hidden)
    w3, b3 = lin(ks[4], ks[5], hidden, action_size)
    return {"w1": w1, "b1": b1, "w2": w2, "b2": b2, "w3": w3, "b3": b3}


def dqn_reference_f32(x, p):
    h1 = jnp.maximum(x @ p["w1"].T + p["b1"], 0.0)
    h2 = jnp.maximum(h1 @ p["w2"].T + p["b2"], 0.0)
    return h2 @ p["w3"].T + p["b3"]


def dqn_reference_bf16(x, p):
    """Reference with the same bf16-operand / f32-accumulate numerics as the kernel."""
    bf = jnp.bfloat16
    h1 = jnp.dot(x.astype(bf), p["w1"].T.astype(bf), preferred_element_type=jnp.float32)
    h1 = jnp.maximum(h1 + p["b1"], 0.0)
    h2 = jnp.dot(h1.astype(bf), p["w2"].T.astype(bf), preferred_element_type=jnp.float32)
    h2 = jnp.maximum(h2 + p["b2"], 0.0)
    return jnp.dot(h2.astype(bf), p["w3"].T.astype(bf),
                   preferred_element_type=jnp.float32) + p["b3"]


if __name__ == "__main__":
    key = jax.random.PRNGKey(0)
    k_params, k_x = jax.random.split(key)

    batch, state_size, action_size = 8, 16, 4
    params = init_params(k_params, state_size, action_size)
    x = jax.random.normal(k_x, (batch, state_size), jnp.float32)

    packed = pack_params(params, state_size, action_size)
    out = dqn_forward(x, packed, action_size=action_size)
    out = jax.block_until_ready(out)

    assert out.shape == (batch, action_size)
    # Exact-numerics check against a bf16-matched reference.
    ref_bf16 = dqn_reference_bf16(x, params)
    assert jnp.allclose(out, ref_bf16, atol=1e-3, rtol=1e-3)
    # Sanity check against the full-f32 reference (bf16 MXU operands -> looser tol).
    # NOTE: bf16 MXU operands can shift Q-values by ~1e-2 relative; this may flip
    # argmax on near-tied actions (acceptable for DQN per review, documented here).
    ref_f32 = dqn_reference_f32(x, params)
    assert jnp.allclose(out, ref_f32, atol=3e-2, rtol=3e-2)

    print("KERNEL_OK")
</pallas_src>

<mosaic_0001>
module attributes {stable_mosaic.version = 11 : i64} {
  func.func @dqn_kernel(%arg0: i32, %arg1: memref<16x128xbf16, #tpu.memory_space<vmem>>, %arg2: memref<64x16xbf16, #tpu.memory_space<vmem>>, %arg3: memref<64x64xbf16, #tpu.memory_space<vmem>>, %arg4: memref<8x64xbf16, #tpu.memory_space<vmem>>, %arg5: memref<64x1xf32, #tpu.memory_space<vmem>>, %arg6: memref<64x1xf32, #tpu.memory_space<vmem>>, %arg7: memref<8x1xf32, #tpu.memory_space<vmem>>, %arg8: memref<8x128xf32, #tpu.memory_space<vmem>>) attributes {dimension_semantics = [#tpu.dimension_semantics<parallel>], iteration_bounds = array<i64: 1>, scalar_prefetch = 0 : i64, scratch_operands = 0 : i64, tpu.core_type = #tpu.core_type<tc>, window_params = [{transform_indices = @transform_0, window_bounds = array<i64: 16, 128>}, {pipeline_mode = #tpu.pipeline_mode<synchronous>, transform_indices = @transform_1, window_bounds = array<i64: 64, 16>}, {pipeline_mode = #tpu.pipeline_mode<synchronous>, transform_indices = @transform_2, window_bounds = array<i64: 64, 64>}, {pipeline_mode = #tpu.pipeline_mode<synchronous>, transform_indices = @transform_3, window_bounds = array<i64: 8, 64>}, {pipeline_mode = #tpu.pipeline_mode<synchronous>, transform_indices = @transform_4, window_bounds = array<i64: 64, 1>}, {pipeline_mode = #tpu.pipeline_mode<synchronous>, transform_indices = @transform_5, window_bounds = array<i64: 64, 1>}, {pipeline_mode = #tpu.pipeline_mode<synchronous>, transform_indices = @transform_6, window_bounds = array<i64: 8, 1>}, {transform_indices = @transform_7, window_bounds = array<i64: 8, 128>}]} {
    %c0 = arith.constant 0 : index
    %c0_0 = arith.constant 0 : index
    %0 = vector.load %arg2[%c0, %c0_0] : memref<64x16xbf16, #tpu.memory_space<vmem>>, vector<64x16xbf16>
    %c0_1 = arith.constant 0 : index
    %c0_2 = arith.constant 0 : index
    %1 = vector.load %arg1[%c0_1, %c0_2] : memref<16x128xbf16, #tpu.memory_space<vmem>>, vector<16x128xbf16>
    %cst = arith.constant dense<0.000000e+00> : vector<64x128xf32>
    %2 = tpu.matmul %0, %1, %cst {dimension_numbers = #tpu.dot_dimension_numbers<[1], [0], [0], [1], [0, 0, 1, 1], [], []>} : vector<64x16xbf16>, vector<16x128xbf16>, vector<64x128xf32> -> vector<64x128xf32>
    %c0_3 = arith.constant 0 : index
    %c0_4 = arith.constant 0 : index
    %3 = vector.load %arg5[%c0_3, %c0_4] : memref<64x1xf32, #tpu.memory_space<vmem>>, vector<64x1xf32>
    %4 = vector.broadcast %3 : vector<64x1xf32> to vector<64x128xf32>
    %5 = arith.addf %2, %4 : vector<64x128xf32>
    %cst_5 = arith.constant 0.000000e+00 : f32
    %6 = vector.broadcast %cst_5 : f32 to vector<64x128xf32>
    %7 = arith.maximumf %5, %6 : vector<64x128xf32>
    %c0_6 = arith.constant 0 : index
    %c0_7 = arith.constant 0 : index
    %8 = vector.load %arg3[%c0_6, %c0_7] : memref<64x64xbf16, #tpu.memory_space<vmem>>, vector<64x64xbf16>
    %9 = arith.truncf %7 : vector<64x128xf32> to vector<64x128xbf16>
    %cst_8 = arith.constant dense<0.000000e+00> : vector<64x128xf32>
    %10 = tpu.matmul %8, %9, %cst_8 {dimension_numbers = #tpu.dot_dimension_numbers<[1], [0], [0], [1], [0, 0, 1, 1], [], []>} : vector<64x64xbf16>, vector<64x128xbf16>, vector<64x128xf32> -> vector<64x128xf32>
    %c0_9 = arith.constant 0 : index
    %c0_10 = arith.constant 0 : index
    %11 = vector.load %arg6[%c0_9, %c0_10] : memref<64x1xf32, #tpu.memory_space<vmem>>, vector<64x1xf32>
    %12 = vector.broadcast %11 : vector<64x1xf32> to vector<64x128xf32>
    %13 = arith.addf %10, %12 : vector<64x128xf32>
    %cst_11 = arith.constant 0.000000e+00 : f32
    %14 = vector.broadcast %cst_11 : f32 to vector<64x128xf32>
    %15 = arith.maximumf %13, %14 : vector<64x128xf32>
    %c0_12 = arith.constant 0 : index
    %c0_13 = arith.constant 0 : index
    %16 = vector.load %arg4[%c0_12, %c0_13] : memref<8x64xbf16, #tpu.memory_space<vmem>>, vector<8x64xbf16>
    %17 = arith.truncf %15 : vector<64x128xf32> to vector<64x128xbf16>
    %cst_14 = arith.constant dense<0.000000e+00> : vector<8x128xf32>
    %18 = tpu.matmul %16, %17, %cst_14 {dimension_numbers = #tpu.dot_dimension_numbers<[1], [0], [0], [1], [0, 0, 1, 1], [], []>} : vector<8x64xbf16>, vector<64x128xbf16>, vector<8x128xf32> -> vector<8x128xf32>
    %c0_15 = arith.constant 0 : index
    %c0_16 = arith.constant 0 : index
    %19 = vector.load %arg7[%c0_15, %c0_16] : memref<8x1xf32, #tpu.memory_space<vmem>>, vector<8x1xf32>
    %20 = vector.broadcast %19 : vector<8x1xf32> to vector<8x128xf32>
    %21 = arith.addf %18, %20 : vector<8x128xf32>
    %c0_17 = arith.constant 0 : index
    %c0_18 = arith.constant 0 : index
    %22 = vector.load %arg8[%c0_17, %c0_18] : memref<8x128xf32, #tpu.memory_space<vmem>>, vector<8x128xf32>
    tpu.vector_store %arg8[%c0_17, %c0_18], %21 {strides = array<i32>} : memref<8x128xf32, #tpu.memory_space<vmem>>, vector<8x128xf32>,
    return
  }
  func.func @transform_0(%arg0: i32) -> (i32, i32) {
    %c0_i32 = arith.constant 0 : i32
    %c0_i32_0 = arith.constant 0 : i32
    return %c0_i32, %arg0 : i32, i32
  }
  func.func @transform_1(%arg0: i32) -> (i32, i32) {
    %c0_i32 = arith.constant 0 : i32
    %c0_i32_0 = arith.constant 0 : i32
    %c0_i32_1 = arith.constant 0 : i32
    return %c0_i32, %c0_i32_0 : i32, i32
  }
  func.func @transform_2(%arg0: i32) -> (i32, i32) {
    %c0_i32 = arith.constant 0 : i32
    %c0_i32_0 = arith.constant 0 : i32
    %c0_i32_1 = arith.constant 0 : i32
    return %c0_i32, %c0_i32_0 : i32, i32
  }
  func.func @transform_3(%arg0: i32) -> (i32, i32) {
    %c0_i32 = arith.constant 0 : i32
    %c0_i32_0 = arith.constant 0 : i32
    %c0_i32_1 = arith.constant 0 : i32
    return %c0_i32, %c0_i32_0 : i32, i32
  }
  func.func @transform_4(%arg0: i32) -> (i32, i32) {
    %c0_i32 = arith.constant 0 : i32
    %c0_i32_0 = arith.constant 0 : i32
    %c0_i32_1 = arith.constant 0 : i32
    return %c0_i32, %c0_i32_0 : i32, i32
  }
  func.func @transform_5(%arg0: i32) -> (i32, i32) {
    %c0_i32 = arith.constant 0 : i32
    %c0_i32_0 = arith.constant 0 : i32
    %c0_i32_1 = arith.constant 0 : i32
    return %c0_i32, %c0_i32_0 : i32, i32
  }
  func.func @transform_6(%arg0: i32) -> (i32, i32) {
    %c0_i32 = arith.constant 0 : i32
    %c0_i32_0 = arith.constant 0 : i32
    %c0_i32_1 = arith.constant 0 : i32
    return %c0_i32, %c0_i32_0 : i32, i32
  }
  func.func @transform_7(%arg0: i32) -> (i32, i32) {
    %c0_i32 = arith.constant 0 : i32
    %c0_i32_0 = arith.constant 0 : i32
    return %c0_i32, %arg0 : i32, i32
  }
}

</mosaic_0001>

<llo_original>
// kernel: dqn_forward.1
$region0: #{dqn_forward.1}
  #allocation0 [shape = 'u32[]', space=smem, size = 0x4, offset = 0x4, fixed_abs, tag = 'smem constant byte address 0x4 - core index']
  #allocation1 [shape = 'u32[144,128]{1,0:T(1,128)}', space=vmem, size = 0x12000, scoped, tag = 'internal scratch']
  %s0 = inlined_call_operand.vmem [shape: bf16[16,128], index: 0, kind: input, shape index: {}]
  %s1 = inlined_call_operand.vmem [shape: bf16[64,16], index: 1, kind: input, shape index: {}]
  %s2 = inlined_call_operand.vmem [shape: bf16[64,64], index: 2, kind: input, shape index: {}]
  %s3 = inlined_call_operand.vmem [shape: bf16[8,64], index: 3, kind: input, shape index: {}]
  %s4 = inlined_call_operand.vmem [shape: f32[64,1], index: 4, kind: input, shape index: {}]
  %s5 = inlined_call_operand.vmem [shape: f32[64,1], index: 5, kind: input, shape index: {}]
  %s6 = inlined_call_operand.vmem [shape: f32[8,1], index: 6, kind: input, shape index: {}]
  %s7 = inlined_call_operand.vmem [shape: f32[8,128], index: 7, kind: output, shape index: {}]
  %s8 = sld [smem:[#allocation0]]
  $region38: #{dqn_forward.1} parent=0
    _
  %s10 = ssub.s32 1, %s8
  %s11 = scalar_select 0, %s10, %s8
  // Predicated region
  $region2: #{dqn_forward.1} parent=0 // pred_check
    _
  $region3: #{dqn_forward.1} parent=0 // pred_check_branch
    %13 = sbr.rel (0) target = $region5
  $region4: #{dqn_forward.1} parent=0 // pred_region
    _
  $region5: #{dqn_forward.1} parent=0 // pred_fallthru
    _
  // Predicated region
  $region6: #{dqn_forward.1} parent=0 // pred_check
    _
  $region7: #{dqn_forward.1} parent=0 // pred_check_branch
    %15 = sbr.rel (0) target = $region9
  $region8: #{dqn_forward.1} parent=0 // pred_region
    _
  $region9: #{dqn_forward.1} parent=0 // pred_fallthru
    _
  // Predicated region
  $region10: #{dqn_forward.1} parent=0 // pred_check
    _
  $region11: #{dqn_forward.1} parent=0 // pred_check_branch
    %17 = sbr.rel (0) target = $region13
  $region12: #{dqn_forward.1} parent=0 // pred_region
    _
  $region13: #{dqn_forward.1} parent=0 // pred_fallthru
    _
  // Predicated region
  $region14: #{dqn_forward.1} parent=0 // pred_check
    _
  $region15: #{dqn_forward.1} parent=0 // pred_check_branch
    %19 = sbr.rel (0) target = $region17
  $region16: #{dqn_forward.1} parent=0 // pred_region
    _
  $region17: #{dqn_forward.1} parent=0 // pred_fallthru
    _
  // Predicated region
  $region18: #{dqn_forward.1} parent=0 // pred_check
    _
  $region19: #{dqn_forward.1} parent=0 // pred_check_branch
    %21 = sbr.rel (0) target = $region21
  $region20: #{dqn_forward.1} parent=0 // pred_region
    _
  $region21: #{dqn_forward.1} parent=0 // pred_fallthru
    _
  // Predicated region
  $region22: #{dqn_forward.1} parent=0 // pred_check
    _
  $region23: #{dqn_forward.1} parent=0 // pred_check_branch
    %23 = sbr.rel (0) target = $region25
  $region24: #{dqn_forward.1} parent=0 // pred_region
    _
  $region25: #{dqn_forward.1} parent=0 // pred_fallthru
    _
  // Predicated region
  $region26: #{dqn_forward.1} parent=0 // pred_check
    _
  $region27: #{dqn_forward.1} parent=0 // pred_check_branch
    %25 = sbr.rel (0) target = $region29
  $region28: #{dqn_forward.1} parent=0 // pred_region
    _
  $region29: #{dqn_forward.1} parent=0 // pred_fallthru
    _
  %v27 = vld [vmem:[%s1] sm:$0xf]
  %v28 = vld [vmem:[%s1 + $0x4] sm:$0xf]
  %v29 = vld [vmem:[%s1 + $0x8] sm:$0xf]
  %v30 = vld [vmem:[%s1 + $0xc] sm:$0xf]
  %v31 = vld [vmem:[%s1 + $0x10] sm:$0xf]
  %v32 = vld [vmem:[%s1 + $0x14] sm:$0xf]
  %v33 = vld [vmem:[%s1 + $0x18] sm:$0xf]
  %v34 = vld [vmem:[%s1 + $0x1c] sm:$0xf]
  %v35 = vld [vmem:[%s0] sm:$0xf]
  %v36 = vld [vmem:[%s0 + $0x4] sm:$0xf]
  %v37 = vld [vmem:[%s4] sm:$0xff]
  %v38 = vld [vmem:[%s4 + $0x8] sm:$0xff]
  %v39 = vld [vmem:[%s4 + $0x10] sm:$0xff]
  %v40 = vld [vmem:[%s4 + $0x18] sm:$0xff]
  %v41 = vld [vmem:[%s4 + $0x20] sm:$0xff]
  %v42 = vld [vmem:[%s4 + $0x28] sm:$0xff]
  %v43 = vld [vmem:[%s4 + $0x30] sm:$0xff]
  %v44 = vld [vmem:[%s4 + $0x38] sm:$0xff]
  %46 = vset.pattern.permute.xlu0 0
  %47 = vperm.xlu0 %46, %v37
  %v48 = vpop.permute.xlu0 %47
  %51 = vset.pattern.permute.xlu0 0
  %52 = vperm.xlu0 %51, %v38
  %v53 = vpop.permute.xlu0 %52
  %56 = vset.pattern.permute.xlu0 0
  %57 = vperm.xlu0 %56, %v39
  %v58 = vpop.permute.xlu0 %57
  %61 = vset.pattern.permute.xlu0 0
  %62 = vperm.xlu0 %61, %v40
  %v63 = vpop.permute.xlu0 %62
  %66 = vset.pattern.permute.xlu0 0
  %67 = vperm.xlu0 %66, %v41
  %v68 = vpop.permute.xlu0 %67
  %71 = vset.pattern.permute.xlu0 0
  %72 = vperm.xlu0 %71, %v42
  %v73 = vpop.permute.xlu0 %72
  %76 = vset.pattern.permute.xlu0 0
  %77 = vperm.xlu0 %76, %v43
  %v78 = vpop.permute.xlu0 %77
  %81 = vset.pattern.permute.xlu0 0
  %82 = vperm.xlu0 %81, %v44
  %v83 = vpop.permute.xlu0 %82
  %v93 = vunpack.c.l.b16 %v27
  %v94 = vunpack.c.l.b16 %v28
  %v95 = vunpack.c.l.b16 %v29
  %v96 = vunpack.c.l.b16 %v30
  %v97 = vunpack.c.l.b16 %v31
  %v98 = vunpack.c.l.b16 %v32
  %v99 = vunpack.c.l.b16 %v33
  %v100 = vunpack.c.l.b16 %v34
  %v101 = vpack.c.b16 %v94, %v93
  %v102 = vpack.c.b16 %v96, %v95
  %v103 = vpack.c.b16 %v98, %v97
  %v104 = vpack.c.b16 %v100, %v99
  %v107 = vunpack.c.l.b16 %v35
  %v108 = vunpack.c.l.b16 %v36
  %v109 = vpack.c.b16 %v108, %v107
  %vm111 = vcmask 130048
  %v113 = vsel %vm111, %v101, 0
  %v116 = vsel %vm111, %v102, 0
  %v119 = vsel %vm111, %v103, 0
  %v122 = vsel %vm111, %v104, 0
  %124 = vmatprep.subr.bf16.mxu0 0
  %125 = vmatpush1.bf16.msra.mxu0 %v109
  %126 = vmatprep.subr.bf16.mxu0 0
  %127 = vmatpush1.bf16.msra.mxu0 0
  %128 = vmatprep.subr.bf16.mxu0 0
  %129 = vmatpush1.bf16.msra.mxu0 0
  %130 = vmatprep.subr.bf16.mxu0 0
  %131 = vmatpush1.bf16.msra.mxu0 0
  %132 = vmatprep.subr.bf16.mxu0 0
  %133 = vmatpush1.bf16.msra.mxu0 0
  %134 = vmatprep.subr.bf16.mxu0 0
  %135 = vmatpush1.bf16.msra.mxu0 0
  %136 = vmatprep.subr.bf16.mxu0 0
  %137 = vmatpush1.bf16.msra.mxu0 0
  %138 = vmatprep.subr.bf16.mxu0 0
  %139 = vmatpush1.bf16.msra.mxu0 0
  %140 = vmatprep.subr.bf16.mxu0 0
  %141 = vmatpush1.bf16.msra.mxu0 0
  %142 = vmatprep.subr.bf16.mxu0 0
  %143 = vmatpush1.bf16.msra.mxu0 0
  %144 = vmatprep.subr.bf16.mxu0 0
  %145 = vmatpush1.bf16.msra.mxu0 0
  %146 = vmatprep.subr.bf16.mxu0 0
  %147 = vmatpush1.bf16.msra.mxu0 0
  %148 = vmatprep.subr.bf16.mxu0 0
  %149 = vmatpush1.bf16.msra.mxu0 0
  %150 = vmatprep.subr.bf16.mxu0 0
  %151 = vmatpush1.bf16.msra.mxu0 0
  %152 = vmatprep.subr.bf16.mxu0 0
  %153 = vmatpush1.bf16.msra.mxu0 0
  %154 = vmatprep.subr.bf16.mxu0 0
  %155 = vmatpush1.bf16.msra.mxu0 0
  %156 = vmatprep.mubr.bf16.mxu0 0
  %157 = vmatmul.mubr.bf16.gmra.mrb[0].mxu0 %v113
  %v158 = vpop.f32.mrb[0].mxu0
  %v159 = vadd.f32 %v48, %v158
  %v160 = vpop.f32.mrb[0].mxu0
  %v161 = vpop.f32.mrb[0].mxu0
  %v162 = vadd.f32 %v53, %v161
  %v163 = vpop.f32.mrb[0].mxu0
  %164 = vmatprep.mubr.bf16.mxu0 0
  %165 = vmatmul.mubr.bf16.gmra.mrb[0].mxu0 %v116
  %v166 = vpop.f32.mrb[0].mxu0
  %v167 = vadd.f32 %v58, %v166
  %v168 = vpop.f32.mrb[0].mxu0
  %v169 = vpop.f32.mrb[0].mxu0
  %v170 = vadd.f32 %v63, %v169
  %v171 = vpop.f32.mrb[0].mxu0
  %172 = vmatprep.mubr.bf16.mxu0 0
  %173 = vmatmul.mubr.bf16.gmra.mrb[0].mxu0 %v119
  %v174 = vpop.f32.mrb[0].mxu0
  %v175 = vadd.f32 %v68, %v174
  %v176 = vpop.f32.mrb[0].mxu0
  %v177 = vpop.f32.mrb[0].mxu0
  %v178 = vadd.f32 %v73, %v177
  %v179 = vpop.f32.mrb[0].mxu0
  %180 = vmatprep.mubr.bf16.mxu0 0
  %181 = vmatmul.mubr.bf16.gmra.mrb[0].mxu0 %v122
  %v182 = vpop.f32.mrb[0].mxu0
  %v183 = vadd.f32 %v78, %v182
  %v184 = vpop.f32.mrb[0].mxu0
  %v185 = vpop.f32.mrb[0].mxu0
  %v186 = vadd.f32 %v83, %v185
  %v187 = vpop.f32.mrb[0].mxu0
  %188 = vdwg.mxu0
  %v189 = vmax.f32 %v159, 0.0
  %v190 = vmax.f32 %v162, 0.0
  %v191 = vmax.f32 %v167, 0.0
  %v192 = vmax.f32 %v170, 0.0
  %v193 = vmax.f32 %v175, 0.0
  %v194 = vmax.f32 %v178, 0.0
  %v195 = vmax.f32 %v183, 0.0
  %v196 = vmax.f32 %v186, 0.0
  %v197 = vld [vmem:[%s2] sm:$0xf]
  %v198 = vld [vmem:[%s2 + $0x4] sm:$0xf]
  %v199 = vld [vmem:[%s2 + $0x8] sm:$0xf]
  %v200 = vld [vmem:[%s2 + $0xc] sm:$0xf]
  %v201 = vld [vmem:[%s2 + $0x10] sm:$0xf]
  %v202 = vld [vmem:[%s2 + $0x14] sm:$0xf]
  %v203 = vld [vmem:[%s2 + $0x18] sm:$0xf]
  %v204 = vld [vmem:[%s2 + $0x1c] sm:$0xf]
  %v205 = vpack.c.bf16 %v190, %v189
  %v206 = vpack.c.bf16 %v192, %v191
  %v207 = vpack.c.bf16 %v194, %v193
  %v208 = vpack.c.bf16 %v196, %v195
  %v209 = vld [vmem:[%s5] sm:$0xff]
  %v210 = vld [vmem:[%s5 + $0x8] sm:$0xff]
  %v211 = vld [vmem:[%s5 + $0x10] sm:$0xff]
  %v212 = vld [vmem:[%s5 + $0x18] sm:$0xff]
  %v213 = vld [vmem:[%s5 + $0x20] sm:$0xff]
  %v214 = vld [vmem:[%s5 + $0x28] sm:$0xff]
  %v215 = vld [vmem:[%s5 + $0x30] sm:$0xff]
  %v216 = vld [vmem:[%s5 + $0x38] sm:$0xff]
  %218 = vset.pattern.permute.xlu0 0
  %219 = vperm.xlu0 %218, %v209
  %v220 = vpop.permute.xlu0 %219
  %223 = vset.pattern.permute.xlu0 0
  %224 = vperm.xlu0 %223, %v210
  %v225 = vpop.permute.xlu0 %224
  %228 = vset.pattern.permute.xlu0 0
  %229 = vperm.xlu0 %228, %v211
  %v230 = vpop.permute.xlu0 %229
  %233 = vset.pattern.permute.xlu0 0
  %234 = vperm.xlu0 %233, %v212
  %v235 = vpop.permute.xlu0 %234
  %238 = vset.pattern.permute.xlu0 0
  %239 = vperm.xlu0 %238, %v213
  %v240 = vpop.permute.xlu0 %239
  %243 = vset.pattern.permute.xlu0 0
  %244 = vperm.xlu0 %243, %v214
  %v245 = vpop.permute.xlu0 %244
  %248 = vset.pattern.permute.xlu0 0
  %249 = vperm.xlu0 %248, %v215
  %v250 = vpop.permute.xlu0 %249
  %253 = vset.pattern.permute.xlu0 0
  %254 = vperm.xlu0 %253, %v216
  %v255 = vpop.permute.xlu0 %254
  %v265 = vunpack.c.l.b16 %v197
  %v266 = vunpack.c.l.b16 %v198
  %v267 = vunpack.c.l.b16 %v199
  %v268 = vunpack.c.l.b16 %v200
  %v269 = vunpack.c.l.b16 %v201
  %v270 = vunpack.c.l.b16 %v202
  %v271 = vunpack.c.l.b16 %v203
  %v272 = vunpack.c.l.b16 %v204
  %v273 = vpack.c.b16 %v266, %v265
  %v274 = vpack.c.b16 %v268, %v267
  %v275 = vpack.c.b16 %v270, %v269
  %v276 = vpack.c.b16 %v272, %v271
  %vm277 = vcmask 523264
  %v279 = vsel %vm277, %v273, 0
  %v282 = vsel %vm277, %v274, 0
  %v285 = vsel %vm277, %v275, 0
  %v288 = vsel %vm277, %v276, 0
  %290 = vmatprep.subr.bf16.mxu0 0
  %291 = vmatpush1.bf16.msra.mxu0 %v205
  %292 = vmatprep.subr.bf16.mxu0 0
  %293 = vmatpush1.bf16.msra.mxu0 %v206
  %294 = vmatprep.subr.bf16.mxu0 0
  %295 = vmatpush1.bf16.msra.mxu0 %v207
  %296 = vmatprep.subr.bf16.mxu0 0
  %297 = vmatpush1.bf16.msra.mxu0 %v208
  %298 = vmatprep.subr.bf16.mxu0 0
  %299 = vmatpush1.bf16.msra.mxu0 0
  %300 = vmatprep.subr.bf16.mxu0 0
  %301 = vmatpush1.bf16.msra.mxu0 0
  %302 = vmatprep.subr.bf16.mxu0 0
  %303 = vmatpush1.bf16.msra.mxu0 0
  %304 = vmatprep.subr.bf16.mxu0 0
  %305 = vmatpush1.bf16.msra.mxu0 0
  %306 = vmatprep.subr.bf16.mxu0 0
  %307 = vmatpush1.bf16.msra.mxu0 0
  %308 = vmatprep.subr.bf16.mxu0 0
  %309 = vmatpush1.bf16.msra.mxu0 0
  %310 = vmatprep.subr.bf16.mxu0 0
  %311 = vmatpush1.bf16.msra.mxu0 0
  %312 = vmatprep.subr.bf16.mxu0 0
  %313 = vmatpush1.bf16.msra.mxu0 0
  %314 = vmatprep.subr.bf16.mxu0 0
  %315 = vmatpush1.bf16.msra.mxu0 0
  %316 = vmatprep.subr.bf16.mxu0 0
  %317 = vmatpush1.bf16.msra.mxu0 0
  %318 = vmatprep.subr.bf16.mxu0 0
  %319 = vmatpush1.bf16.msra.mxu0 0
  %320 = vmatprep.subr.bf16.mxu0 0
  %321 = vmatpush1.bf16.msra.mxu0 0
  %322 = vmatprep.mubr.bf16.mxu0 0
  %323 = vmatmul.mubr.bf16.gmra.mrb[0].mxu0 %v279
  %v324 = vpop.f32.mrb[0].mxu0
  %v325 = vadd.f32 %v220, %v324
  %v326 = vpop.f32.mrb[0].mxu0
  %v327 = vpop.f32.mrb[0].mxu0
  %v328 = vadd.f32 %v225, %v327
  %v329 = vpop.f32.mrb[0].mxu0
  %330 = vmatprep.mubr.bf16.mxu0 0
  %331 = vmatmul.mubr.bf16.gmra.mrb[0].mxu0 %v282
  %v332 = vpop.f32.mrb[0].mxu0
  %v333 = vadd.f32 %v230, %v332
  %v334 = vpop.f32.mrb[0].mxu0
  %v335 = vpop.f32.mrb[0].mxu0
  %v336 = vadd.f32 %v235, %v335
  %v337 = vpop.f32.mrb[0].mxu0
  %338 = vmatprep.mubr.bf16.mxu0 0
  %339 = vmatmul.mubr.bf16.gmra.mrb[0].mxu0 %v285
  %v340 = vpop.f32.mrb[0].mxu0
  %v341 = vadd.f32 %v240, %v340
  %v342 = vpop.f32.mrb[0].mxu0
  %v343 = vpop.f32.mrb[0].mxu0
  %v344 = vadd.f32 %v245, %v343
  %v345 = vpop.f32.mrb[0].mxu0
  %346 = vmatprep.mubr.bf16.mxu0 0
  %347 = vmatmul.mubr.bf16.gmra.mrb[0].mxu0 %v288
  %v348 = vpop.f32.mrb[0].mxu0
  %v349 = vadd.f32 %v250, %v348
  %v350 = vpop.f32.mrb[0].mxu0
  %v351 = vpop.f32.mrb[0].mxu0
  %v352 = vadd.f32 %v255, %v351
  %v353 = vpop.f32.mrb[0].mxu0
  %354 = vdwg.mxu0
  %v355 = vmax.f32 %v325, 0.0
  %v356 = vmax.f32 %v328, 0.0
  %v357 = vmax.f32 %v333, 0.0
  %v358 = vmax.f32 %v336, 0.0
  %v359 = vmax.f32 %v341, 0.0
  %v360 = vmax.f32 %v344, 0.0
  %v361 = vmax.f32 %v349, 0.0
  %v362 = vmax.f32 %v352, 0.0
  %v363 = vld [vmem:[%s3] sm:$0xf]
  %v364 = vpack.c.bf16 %v356, %v355
  %v365 = vpack.c.bf16 %v358, %v357
  %v366 = vpack.c.bf16 %v360, %v359
  %v367 = vpack.c.bf16 %v362, %v361
  %v368 = vld [vmem:[%s6] sm:$0xff]
  %370 = vset.pattern.permute.xlu0 0
  %371 = vperm.xlu0 %370, %v368
  %v372 = vpop.permute.xlu0 %371
  %v375 = vsel %vm277, %v363, 0
  %377 = vmatprep.subr.bf16.mxu0 0
  %378 = vmatpush1.bf16.msra.mxu0 %v364
  %379 = vmatprep.subr.bf16.mxu0 0
  %380 = vmatpush1.bf16.msra.mxu0 %v365
  %381 = vmatprep.subr.bf16.mxu0 0
  %382 = vmatpush1.bf16.msra.mxu0 %v366
  %383 = vmatprep.subr.bf16.mxu0 0
  %384 = vmatpush1.bf16.msra.mxu0 %v367
  %385 = vmatprep.subr.bf16.mxu0 0
  %386 = vmatpush1.bf16.msra.mxu0 0
  %387 = vmatprep.subr.bf16.mxu0 0
  %388 = vmatpush1.bf16.msra.mxu0 0
  %389 = vmatprep.subr.bf16.mxu0 0
  %390 = vmatpush1.bf16.msra.mxu0 0
  %391 = vmatprep.subr.bf16.mxu0 0
  %392 = vmatpush1.bf16.msra.mxu0 0
  %393 = vmatprep.subr.bf16.mxu0 0
  %394 = vmatpush1.bf16.msra.mxu0 0
  %395 = vmatprep.subr.bf16.mxu0 0
  %396 = vmatpush1.bf16.msra.mxu0 0
  %397 = vmatprep.subr.bf16.mxu0 0
  %398 = vmatpush1.bf16.msra.mxu0 0
  %399 = vmatprep.subr.bf16.mxu0 0
  %400 = vmatpush1.bf16.msra.mxu0 0
  %401 = vmatprep.subr.bf16.mxu0 0
  %402 = vmatpush1.bf16.msra.mxu0 0
  %403 = vmatprep.subr.bf16.mxu0 0
  %404 = vmatpush1.bf16.msra.mxu0 0
  %405 = vmatprep.subr.bf16.mxu0 0
  %406 = vmatpush1.bf16.msra.mxu0 0
  %407 = vmatprep.subr.bf16.mxu0 0
  %408 = vmatpush1.bf16.msra.mxu0 0
  %409 = vmatprep.mubr.bf16.mxu0 0
  %410 = vmatmul.mubr.bf16.gmra.mrb[0].mxu0 %v375
  %v411 = vpop.f32.mrb[0].mxu0
  %v412 = vadd.f32 %v372, %v411
  %v413 = vpop.f32.mrb[0].mxu0
  %v414 = vpop.f32.mrb[0].mxu0
  %v415 = vpop.f32.mrb[0].mxu0
  %416 = vdwg.mxu0
  %417 = vst [vmem:[%s7] sm:$0xff] %v412
  // Predicated region
  $region30: #{dqn_forward.1} parent=0 // pred_check
    _
  $region31: #{dqn_forward.1} parent=0 // pred_check_branch
    %419 = sbr.rel (0) target = $region33
  $region32: #{dqn_forward.1} parent=0 // pred_region
    _
  $region33: #{dqn_forward.1} parent=0 // pred_fallthru
    _
  // Predicated region
  $region34: #{dqn_forward.1} parent=0 // pred_check
    _
  $region35: #{dqn_forward.1} parent=0 // pred_check_branch
    %421 = sbr.rel (0) target = $region37
  $region36: #{dqn_forward.1} parent=0 // pred_region
    _
  $region37: #{dqn_forward.1} parent=0 // pred_fallthru
    _

</llo_original>
